<compile_context>
chip_gen: v6e
topology: v6e:2x2x1
jax: 0.10.0
libtpu: 0.0.40
codegen_flags: <defaults>
</compile_context>

<pallas_src>
import functools

import jax
import jax.numpy as jnp
from jax.experimental import pallas as pl
from jax.experimental.pallas import tpu as pltpu


# Keep 2x (double-buffered) feat slab comfortably inside v7x's 64 MiB VMEM.
_FEAT_PIPELINE_BUDGET_BYTES = 32 * 1024 * 1024
_VMEM_LIMIT_CAP_BYTES = 48 * 1024 * 1024


def _avgpool_kernel(feat_ref, w_ref, b_ref, out_ref, *, inv_seq_len):
    """Pool over S first (linearity), then one small matmul + fused bias."""
    # (tile_b, S, Din) -> (tile_b, Din): sublane reduction, stays in f32.
    pooled = feat_ref[...].sum(axis=1) * inv_seq_len
    out_ref[...] = (
        jnp.dot(pooled, w_ref[...], preferred_element_type=jnp.float32) + b_ref[...]
    ).astype(out_ref.dtype)


def _pick_tile_b(B, S, Din, itemsize):
    """Largest divisor of B that is sublane-friendly, fits the VMEM budget and
    (when possible) keeps >= 2 grid steps so v7x's megacore split is usable."""
    divisors = [d for d in range(1, B + 1) if B % d == 0]

    def layout_ok(tb):  # output block (tile_b, Dout): tile_b % 8 == 0 or full B
        return tb == B or tb % 8 == 0

    def fits(tb):  # double-buffered feat slab
        return 2 * tb * S * Din * itemsize <= _FEAT_PIPELINE_BUDGET_BYTES

    for want_two_steps in (True, False):
        best = None
        for tb in divisors:
            if not layout_ok(tb) or not fits(tb):
                continue
            if want_two_steps and B // tb < 2:
                continue
            if best is None or tb > best:
                best = tb
        if best is not None:
            return best
    for tb in divisors:  # fallback: smallest sublane-friendly divisor
        if layout_ok(tb):
            return tb
    return B


def _build_call(B, S, Din, Dout, tile_b, out_dtype, *, single_buffer_resident):
    resident_kwargs = (
        {"pipeline_mode": pl.Buffered(1)} if single_buffer_resident else {}
    )
    itemsize = 4
    feat_tile_bytes = tile_b * S * Din * itemsize
    weight_bytes = Din * Dout * itemsize
    out_tile_bytes = tile_b * Dout * itemsize
    w_bufs = 1 if single_buffer_resident else 2
    vmem_needed = (
        2 * feat_tile_bytes
        + w_bufs * (weight_bytes + Dout * itemsize)
        + 2 * out_tile_bytes
    )
    vmem_limit = int(
        min(max(vmem_needed + vmem_needed // 4 + (1 << 20), 16 << 20),
            _VMEM_LIMIT_CAP_BYTES)
    )

    cost = pl.CostEstimate(
        flops=2 * B * Din * Dout + B * S * Din + B * Dout,
        transcendentals=0,
        bytes_accessed=(B * S * Din + Din * Dout + Dout + B * Dout) * itemsize,
    )

    kernel = functools.partial(_avgpool_kernel, inv_seq_len=1.0 / float(S))

    return pl.pallas_call(
        kernel,
        out_shape=jax.ShapeDtypeStruct((B, Dout), out_dtype),
        grid=(B // tile_b,),
        in_specs=[
            # activations: one full (tile_b, S, Din) slab per grid step.
            pl.BlockSpec((tile_b, S, Din), lambda bi: (bi, 0, 0)),
            # weight / bias: resident in VMEM across the whole grid.
            pl.BlockSpec((Din, Dout), lambda bi: (0, 0), **resident_kwargs),
            pl.BlockSpec((1, Dout), lambda bi: (0, 0), **resident_kwargs),
        ],
        out_specs=pl.BlockSpec((tile_b, Dout), lambda bi: (bi, 0)),
        compiler_params=pltpu.CompilerParams(
            dimension_semantics=("parallel",),
            vmem_limit_bytes=vmem_limit,
        ),
        cost_estimate=cost,
    )


def avg_pool_net(feat, weight, bias, *, tile_b=None):
    """Fused AvgPoolNet forward: mean(feat @ W + b, axis=1)."""
    B, S, Din = feat.shape
    Din_w, Dout = weight.shape
    assert Din_w == Din, "weight must be (input_dim, output_dim)"
    assert bias.shape == (1, Dout)

    if tile_b is None:
        tile_b = _pick_tile_b(B, S, Din, feat.dtype.itemsize)
    assert B % tile_b == 0, "tile_b must divide B"

    try:
        call = _build_call(B, S, Din, Dout, tile_b, feat.dtype,
                           single_buffer_resident=True)
        return call(feat, weight, bias)
    except Exception:
        # Fallback for Pallas versions without BlockSpec(pipeline_mode=...):
        # default double-buffered resident weight/bias (correct, a bit more VMEM).
        call = _build_call(B, S, Din, Dout, tile_b, feat.dtype,
                           single_buffer_resident=False)
        return call(feat, weight, bias)


def _reference(feat, weight, bias):
    return jnp.mean(feat @ weight + bias, axis=1)


if __name__ == "__main__":
    # Small shapes consistent with the module (default is 16 x 50 x 2048 -> 16 x 512;
    # scaled down here but keeping the non-multiple-of-8 sequence length S=50).
    B, S, Din, Dout = 16, 50, 256, 128

    key = jax.random.PRNGKey(0)
    k_feat, k_w, k_b = jax.random.split(key, 3)

    feat = jax.random.normal(k_feat, (B, S, Din), dtype=jnp.float32)
    weight = 0.05 * jax.random.normal(k_w, (Din, Dout), dtype=jnp.float32)
    bias = 0.05 * jax.random.normal(k_b, (1, Dout), dtype=jnp.float32)

    out = avg_pool_net(feat, weight, bias)
    out = jax.block_until_ready(out)

    ref = _reference(feat, weight, bias)
    assert out.shape == (B, Dout)
    assert jnp.allclose(out, ref, atol=2e-5, rtol=2e-5), "mismatch vs reference"

    print("KERNEL_OK")
</pallas_src>

<mosaic_0001>
module attributes {stable_mosaic.version = 11 : i64} {
  func.func @_avgpool_kernel(%arg0: i32, %arg1: memref<8x50x256xf32, #tpu.memory_space<vmem>>, %arg2: memref<256x128xf32, #tpu.memory_space<vmem>>, %arg3: memref<1x128xf32, #tpu.memory_space<vmem>>, %arg4: memref<8x128xf32, #tpu.memory_space<vmem>>) attributes {dimension_semantics = [#tpu.dimension_semantics<parallel>], iteration_bounds = array<i64: 2>, scalar_prefetch = 0 : i64, scratch_operands = 0 : i64, tpu.core_type = #tpu.core_type<tc>, window_params = [{transform_indices = @transform_0, window_bounds = array<i64: 8, 50, 256>}, {pipeline_mode = #tpu.pipeline_mode<synchronous>, transform_indices = @transform_1, window_bounds = array<i64: 256, 128>}, {pipeline_mode = #tpu.pipeline_mode<synchronous>, transform_indices = @transform_2, window_bounds = array<i64: 1, 128>}, {transform_indices = @transform_3, window_bounds = array<i64: 8, 128>}]} {
    %c0 = arith.constant 0 : index
    %c0_0 = arith.constant 0 : index
    %c0_1 = arith.constant 0 : index
    %0 = vector.load %arg1[%c0, %c0_0, %c0_1] : memref<8x50x256xf32, #tpu.memory_space<vmem>>, vector<8x50x256xf32>
    %cst = arith.constant dense<0.000000e+00> : vector<8x256xf32>
    %1 = vector.multi_reduction <add>, %0, %cst [1] : vector<8x50x256xf32> to vector<8x256xf32>
    %cst_2 = arith.constant 2.000000e-02 : f32
    %2 = vector.broadcast %cst_2 : f32 to vector<8x256xf32>
    %3 = arith.mulf %1, %2 : vector<8x256xf32>
    %c0_3 = arith.constant 0 : index
    %c0_4 = arith.constant 0 : index
    %4 = vector.load %arg2[%c0_3, %c0_4] : memref<256x128xf32, #tpu.memory_space<vmem>>, vector<256x128xf32>
    %cst_5 = arith.constant dense<0.000000e+00> : vector<8x128xf32>
    %5 = tpu.matmul %3, %4, %cst_5 {dimension_numbers = #tpu.dot_dimension_numbers<[1], [0], [0], [1], [0, 0, 1, 1], [], []>} : vector<8x256xf32>, vector<256x128xf32>, vector<8x128xf32> -> vector<8x128xf32>
    %c0_6 = arith.constant 0 : index
    %c0_7 = arith.constant 0 : index
    %6 = vector.load %arg3[%c0_6, %c0_7] : memref<1x128xf32, #tpu.memory_space<vmem>>, vector<1x128xf32>
    %7 = vector.broadcast %6 : vector<1x128xf32> to vector<8x128xf32>
    %8 = arith.addf %5, %7 : vector<8x128xf32>
    %c0_8 = arith.constant 0 : index
    %c0_9 = arith.constant 0 : index
    %9 = vector.load %arg4[%c0_8, %c0_9] : memref<8x128xf32, #tpu.memory_space<vmem>>, vector<8x128xf32>
    tpu.vector_store %arg4[%c0_8, %c0_9], %8 {strides = array<i32>} : memref<8x128xf32, #tpu.memory_space<vmem>>, vector<8x128xf32>,
    return
  }
  func.func @transform_0(%arg0: i32) -> (i32, i32, i32) {
    %c0_i32 = arith.constant 0 : i32
    %c0_i32_0 = arith.constant 0 : i32
    %c0_i32_1 = arith.constant 0 : i32
    return %arg0, %c0_i32, %c0_i32_0 : i32, i32, i32
  }
  func.func @transform_1(%arg0: i32) -> (i32, i32) {
    %c0_i32 = arith.constant 0 : i32
    %c0_i32_0 = arith.constant 0 : i32
    %c0_i32_1 = arith.constant 0 : i32
    return %c0_i32, %c0_i32_0 : i32, i32
  }
  func.func @transform_2(%arg0: i32) -> (i32, i32) {
    %c0_i32 = arith.constant 0 : i32
    %c0_i32_0 = arith.constant 0 : i32
    %c0_i32_1 = arith.constant 0 : i32
    return %c0_i32, %c0_i32_0 : i32, i32
  }
  func.func @transform_3(%arg0: i32) -> (i32, i32) {
    %c0_i32 = arith.constant 0 : i32
    %c0_i32_0 = arith.constant 0 : i32
    return %arg0, %c0_i32 : i32, i32
  }
}

module attributes {stable_mosaic.version = 11 : i64} {
  func.func @_avgpool_kernel(%arg0: i32, %arg1: memref<8x50x256xf32, #tpu.memory_space<vmem>>, %arg2: memref<256x128xf32, #tpu.memory_space<vmem>>, %arg3: memref<1x128xf32, #tpu.memory_space<vmem>>, %arg4: memref<8x128xf32, #tpu.memory_space<vmem>>) attributes {dimension_semantics = [#tpu.dimension_semantics<parallel>], iteration_bounds = array<i64: 2>, scalar_prefetch = 0 : i64, scratch_operands = 0 : i64, tpu.core_type = #tpu.core_type<tc>, window_params = [{transform_indices = @transform_0, window_bounds = array<i64: 8, 50, 256>}, {pipeline_mode = #tpu.pipeline_mode<synchronous>, transform_indices = @transform_1, window_bounds = array<i64: 256, 128>}, {pipeline_mode = #tpu.pipeline_mode<synchronous>, transform_indices = @transform_2, window_bounds = array<i64: 1, 128>}, {transform_indices = @transform_3, window_bounds = array<i64: 8, 128>}]} {
    %c0 = arith.constant 0 : index
    %c0_0 = arith.constant 0 : index
    %c0_1 = arith.constant 0 : index
    %0 = vector.load %arg1[%c0, %c0_0, %c0_1] : memref<8x50x256xf32, #tpu.memory_space<vmem>>, vector<8x50x256xf32>
    %cst = arith.constant dense<0.000000e+00> : vector<8x256xf32>
    %1 = vector.multi_reduction <add>, %0, %cst [1] : vector<8x50x256xf32> to vector<8x256xf32>
    %cst_2 = arith.constant 2.000000e-02 : f32
    %2 = vector.broadcast %cst_2 : f32 to vector<8x256xf32>
    %3 = arith.mulf %1, %2 : vector<8x256xf32>
    %c0_3 = arith.constant 0 : index
    %c0_4 = arith.constant 0 : index
    %4 = vector.load %arg2[%c0_3, %c0_4] : memref<256x128xf32, #tpu.memory_space<vmem>>, vector<256x128xf32>
    %cst_5 = arith.constant dense<0.000000e+00> : vector<8x128xf32>
    %5 = tpu.matmul %3, %4, %cst_5 {dimension_numbers = #tpu.dot_dimension_numbers<[1], [0], [0], [1], [0, 0, 1, 1], [], []>} : vector<8x256xf32>, vector<256x128xf32>, vector<8x128xf32> -> vector<8x128xf32>
    %c0_6 = arith.constant 0 : index
    %c0_7 = arith.constant 0 : index
    %6 = vector.load %arg3[%c0_6, %c0_7] : memref<1x128xf32, #tpu.memory_space<vmem>>, vector<1x128xf32>
    %7 = vector.broadcast %6 : vector<1x128xf32> to vector<8x128xf32>
    %8 = arith.addf %5, %7 : vector<8x128xf32>
    %c0_8 = arith.constant 0 : index
    %c0_9 = arith.constant 0 : index
    %9 = vector.load %arg4[%c0_8, %c0_9] : memref<8x128xf32, #tpu.memory_space<vmem>>, vector<8x128xf32>
    tpu.vector_store %arg4[%c0_8, %c0_9], %8 {strides = array<i32>} : memref<8x128xf32, #tpu.memory_space<vmem>>, vector<8x128xf32>,
    return
  }
  func.func @transform_0(%arg0: i32) -> (i32, i32, i32) {
    %c0_i32 = arith.constant 0 : i32
    %c0_i32_0 = arith.constant 0 : i32
    %c0_i32_1 = arith.constant 0 : i32
    return %arg0, %c0_i32, %c0_i32_0 : i32, i32, i32
  }
  func.func @transform_1(%arg0: i32) -> (i32, i32) {
    %c0_i32 = arith.constant 0 : i32
    %c0_i32_0 = arith.constant 0 : i32
    %c0_i32_1 = arith.constant 0 : i32
    return %c0_i32, %c0_i32_0 : i32, i32
  }
  func.func @transform_2(%arg0: i32) -> (i32, i32) {
    %c0_i32 = arith.constant 0 : i32
    %c0_i32_0 = arith.constant 0 : i32
    %c0_i32_1 = arith.constant 0 : i32
    return %c0_i32, %c0_i32_0 : i32, i32
  }
  func.func @transform_3(%arg0: i32) -> (i32, i32) {
    %c0_i32 = arith.constant 0 : i32
    %c0_i32_0 = arith.constant 0 : i32
    return %arg0, %c0_i32 : i32, i32
  }
}

</mosaic_0001>

<llo_original>
// kernel: tpu_custom_call.1
$region0: #{tpu_custom_call.1}
  #allocation0 [shape = 'u32[]', space=smem, size = 0x4, offset = 0x4, fixed_abs, tag = 'smem constant byte address 0x4 - core index']
  #allocation1 [shape = 'u32[144,128]{1,0:T(1,128)}', space=vmem, size = 0x12000, scoped, tag = 'internal scratch']
  %s0 = inlined_call_operand.vmem [shape: f32[16,50,256], index: 0, kind: input, shape index: {}]
  %s1 = inlined_call_operand.vmem [shape: f32[256,128], index: 1, kind: input, shape index: {}]
  %s2 = inlined_call_operand.vmem [shape: f32[1,128], index: 2, kind: input, shape index: {}]
  %s3 = inlined_call_operand.hbm [shape: f32[16,128], index: 3, kind: output, shape index: {}]
  %s4 = sld [smem:[#allocation0]]
  $region45: #{tpu_custom_call.1} parent=0
    _
  %s6 = ssub.s32 1, %s4
  %s7 = scalar_select 0, %s6, %s4
  $region1: #{tpu_custom_call.1} parent=0
    #allocation2 [shape = 'u8[8192]{0}', space=vmem, size = 0x2000, scoped, tag = 'output window, operand 0']
    #allocation3 [shape = 's32[2]{0}', space=sflag, size = 0x8, scoped, tag = 'scoped memory for tpu_custom_call.1']
    %8 = vsyncpa [#allocation3], 0
    %s9 = scalar_lea.sflag [#allocation3], 1
    %10 = vsyncpa %s9, 0
    loop: start=0, step=1, limit=4
    $region2: #{tpu_custom_call.1} parent=1 // loop_pre_header
      _
    $region3: #{tpu_custom_call.1} parent=1 // loop_header
      %s12 = sphi 0, %s16
      %p13 = scmp.ge.s32.totalorder %s12, 4
      %s22 = sphi 0, %s24
      %s25 = sphi 0, %s22
      %s26 = sphi 0, %s25
      %s42 = sphi 0, %s26
      %s46 = sphi 0, %s46
      %s48 = sphi 0, %s46
      %s49 = sphi 0, %s48
      %s63 = sphi 0, %s49
      %s67 = sphi 0, %s67
      %s69 = sphi 0, %s67
      %s70 = sphi 0, %s69
      %s84 = sphi 0, %s70
      %s90 = sphi 0, %s92
      %s93 = sphi 0, %s90
      %s94 = sphi 0, %s93
      %s110 = sphi 0, %s94
    $region4: #{tpu_custom_call.1} parent=1 // loop_header_branch
      %15 = sbr.rel (%p13) target = $region8
    $region5: #{tpu_custom_call.1} parent=1 // loop_body
      %s17 = ssub.s32 %s12, 1
      %s18 = ssub.s32 %s12, 2
      %s19 = sadd.s32 %s12, 1
      %s20 = ssub.s32 %s12, %s19
      %p21 = scmp.eq.s32.totalorder %s20, 0
      %s23 = sadd.s32 %s22, 1
      %s24 = scalar_select %p21, %s22, %s23
      %p27 = pneg %p21
      %p28 = scmp.eq.s32.totalorder %s12, 1
      %p29 = por %p27, %p28
      %p30 = scmp.ne.s32.totalorder %s22, %s25
      %p31 = scmp.eq.s32.totalorder %s12, 0
      %p32 = por %p30, %p31
      %p33 = scmp.ne.s32.totalorder %s22, %s25
      %p34 = scmp.eq.s32.totalorder %s17, 1
      %p35 = por %p33, %p34
      %p36 = scmp.ne.s32.totalorder %s25, %s26
      %p37 = scmp.eq.s32.totalorder %s17, 0
      %p38 = por %p36, %p37
      %p39 = scmp.ne.s32.totalorder %s25, %s26
      %p40 = scmp.eq.s32.totalorder %s18, 1
      %p41 = por %p39, %p40
      %p43 = scmp.ne.s32.totalorder %s26, %s42
      %p44 = scmp.eq.s32.totalorder %s18, 0
      %p45 = por %p43, %p44
      %s47 = sadd.s32 %s46, 1
      %p50 = scmp.eq.s32.totalorder %s12, 1
      %p51 = scmp.ne.s32.totalorder %s46, %s48
      %p52 = scmp.eq.s32.totalorder %s12, 0
      %p53 = por %p51, %p52
      %p54 = scmp.ne.s32.totalorder %s46, %s48
      %p55 = scmp.eq.s32.totalorder %s17, 1
      %p56 = por %p54, %p55
      %p57 = scmp.ne.s32.totalorder %s48, %s49
      %p58 = scmp.eq.s32.totalorder %s17, 0
      %p59 = por %p57, %p58
      %p60 = scmp.ne.s32.totalorder %s48, %s49
      %p61 = scmp.eq.s32.totalorder %s18, 1
      %p62 = por %p60, %p61
      %p64 = scmp.ne.s32.totalorder %s49, %s63
      %p65 = scmp.eq.s32.totalorder %s18, 0
      %p66 = por %p64, %p65
      %s68 = sadd.s32 %s67, 1
      %p71 = scmp.eq.s32.totalorder %s12, 1
      %p72 = scmp.ne.s32.totalorder %s67, %s69
      %p73 = scmp.eq.s32.totalorder %s12, 0
      %p74 = por %p72, %p73
      %p75 = scmp.ne.s32.totalorder %s67, %s69
      %p76 = scmp.eq.s32.totalorder %s17, 1
      %p77 = por %p75, %p76
      %p78 = scmp.ne.s32.totalorder %s69, %s70
      %p79 = scmp.eq.s32.totalorder %s17, 0
      %p80 = por %p78, %p79
      %p81 = scmp.ne.s32.totalorder %s69, %s70
      %p82 = scmp.eq.s32.totalorder %s18, 1
      %p83 = por %p81, %p82
      %p85 = scmp.ne.s32.totalorder %s70, %s84
      %p86 = scmp.eq.s32.totalorder %s18, 0
      %p87 = por %p85, %p86
      %s88 = ssub.s32 %s12, %s19
      %p89 = scmp.eq.s32.totalorder %s88, 0
      %s91 = sadd.s32 %s90, 1
      %s92 = scalar_select %p89, %s90, %s91
      %p95 = pneg %p89
      %p96 = scmp.eq.s32.totalorder %s12, 1
      %p97 = por %p95, %p96
      %p98 = scmp.ne.s32.totalorder %s90, %s93
      %p99 = scmp.eq.s32.totalorder %s12, 0
      %p100 = por %p98, %p99
      %p101 = scmp.ne.s32.totalorder %s90, %s93
      %p102 = scmp.eq.s32.totalorder %s17, 1
      %p103 = por %p101, %p102
      %p104 = scmp.ne.s32.totalorder %s93, %s94
      %p105 = scmp.eq.s32.totalorder %s17, 0
      %p106 = por %p104, %p105
      %p107 = scmp.ne.s32.totalorder %s93, %s94
      %p108 = scmp.eq.s32.totalorder %s18, 1
      %p109 = por %p107, %p108
      %p111 = scmp.ne.s32.totalorder %s94, %s110
      %p112 = scmp.eq.s32.totalorder %s18, 0
      %p113 = por %p111, %p112
      %p114 = scmp.le.s32.totalorder 1, %s12
      %p115 = scmp.lt.s32.totalorder %s12, 3
      %p116 = pnand %p114, %p115
      %p117 = pneg %p116
      // Predicated region
      $region9: #{tpu_custom_call.1} parent=5 // pred_check
        _
      $region10: #{tpu_custom_call.1} parent=5 // pred_check_branch
        %119 = sbr.rel (%p116) target = $region12
      $region11: #{tpu_custom_call.1} parent=5 // pred_region
        %s120 = ssub.s32 %s12, 1
        // Predicated region
        $region13: #{tpu_custom_call.1} parent=11 // pred_check
          %p121 = pneg %p59
        $region14: #{tpu_custom_call.1} parent=11 // pred_check_branch
          %123 = sbr.rel (%p121) target = $region16
        $region15: #{tpu_custom_call.1} parent=11 // pred_region
          _
        $region16: #{tpu_custom_call.1} parent=11 // pred_fallthru
          _
        // Predicated region
        $region17: #{tpu_custom_call.1} parent=11 // pred_check
          %p124 = pneg %p80
        $region18: #{tpu_custom_call.1} parent=11 // pred_check_branch
          %126 = sbr.rel (%p124) target = $region20
        $region19: #{tpu_custom_call.1} parent=11 // pred_region
          _
        $region20: #{tpu_custom_call.1} parent=11 // pred_fallthru
          _
      $region12: #{tpu_custom_call.1} parent=5 // pred_fallthru
        _
      %p127 = scmp.lt.s32.totalorder %s12, 2
      // Predicated region
      $region21: #{tpu_custom_call.1} parent=5 // pred_check
        %p128 = pneg %p127
      $region22: #{tpu_custom_call.1} parent=5 // pred_check_branch
        %130 = sbr.rel (%p128) target = $region24
      $region23: #{tpu_custom_call.1} parent=5 // pred_region
        // Predicated region
        $region25: #{tpu_custom_call.1} parent=23 // pred_check
          %p131 = pneg %p32
        $region26: #{tpu_custom_call.1} parent=23 // pred_check_branch
          %133 = sbr.rel (%p131) target = $region28
        $region27: #{tpu_custom_call.1} parent=23 // pred_region
          %s134 = smul.u32 8, %s12
          %p135 = scmp.lt.s32.totalorder %s134, 15
          %s136 = scalar_select %p135, %s134, 15
          %s137 = smul.addr %s136, 14
          %s138 = smul.addr %s137, 8
          %s139 = scalar_lea.vmem %s0, %s138
          %s140 = smul.u32 8, %s12
        $region28: #{tpu_custom_call.1} parent=23 // pred_fallthru
          _
      $region24: #{tpu_custom_call.1} parent=5 // pred_fallthru
        _
      %p141 = scmp.le.s32.totalorder 1, %s12
      %p142 = scmp.lt.s32.totalorder %s12, 3
      %p143 = pnand %p141, %p142
      %p144 = pneg %p143
      // Predicated region
      $region29: #{tpu_custom_call.1} parent=5 // pred_check
        _
      $region30: #{tpu_custom_call.1} parent=5 // pred_check_branch
        %146 = sbr.rel (%p143) target = $region32
      $region31: #{tpu_custom_call.1} parent=5 // pred_region
        %s147 = ssub.s32 %s12, 1
        %s148 = smul.u32 8, %s17
        %p149 = scmp.lt.s32.totalorder %s148, 15
        %s150 = scalar_select %p149, %s148, 15
        %s151 = smul.addr %s150, 14
        %s152 = smul.addr %s151, 8
        %s153 = scalar_lea.vmem %s0, %s152
        %p154 = pneg %p38
        %p155 = pneg %p35
        %p156 = pneg %p59
        %p157 = pneg %p56
        %p158 = pneg %p80
        %p159 = pneg %p77
        %p160 = pneg %p106
        %p161 = pneg %p103
        %s162 = sand.u32 %s93, 1
        %s163 = scalar_lea.sflag [#allocation3], %s162
        %s164 = sand.u32 %s93, 1
        %s165 = smul.addr %s164, 8
        %s166 = scalar_lea.vmem [#allocation2], %s165
        %s167 = smul.u32 8, %s17
        %p168 = scmp.lt.s32.totalorder %s167, 15
        %s169 = scalar_select %p168, %s167, 15
        %s170 = smul.addr %s169, 14
        %s171 = smul.addr %s170, 8
        %s172 = scalar_lea.vmem %s0, %s171
        %s173 = smul.u32 8, %s17
        %v174 = vld [vmem:[%s172] sm:$0xff]
        %v175 = vld [vmem:[%s172 + $0x8] sm:$0xff]
        %v176 = vld [vmem:[%s172 + $0x10] sm:$0xff]
        %v177 = vld [vmem:[%s172 + $0x18] sm:$0xff]
        %v178 = vld [vmem:[%s172 + $0x20] sm:$0xff]
        %v179 = vld [vmem:[%s172 + $0x28] sm:$0xff]
        %v180 = vld [vmem:[%s172 + $0x30] sm:$0xff]
        %v181 = vld [vmem:[%s172 + $0x38] sm:$0xff]
        %v182 = vld [vmem:[%s172 + $0x40] sm:$0xff]
        %v183 = vld [vmem:[%s172 + $0x48] sm:$0xff]
        %v184 = vld [vmem:[%s172 + $0x50] sm:$0xff]
        %v185 = vld [vmem:[%s172 + $0x58] sm:$0xff]
        %v186 = vld [vmem:[%s172 + $0x60] sm:$0x3]
        %v187 = vld [vmem:[%s172 + $0x68] sm:$0x3]
        %v188 = vld [vmem:[%s172 + $0x70] sm:$0xff]
        %v189 = vld [vmem:[%s172 + $0x78] sm:$0xff]
        %v190 = vld [vmem:[%s172 + $0x80] sm:$0xff]
        %v191 = vld [vmem:[%s172 + $0x88] sm:$0xff]
        %v192 = vld [vmem:[%s172 + $0x90] sm:$0xff]
        %v193 = vld [vmem:[%s172 + $0x98] sm:$0xff]
        %v194 = vld [vmem:[%s172 + $0xa0] sm:$0xff]
        %v195 = vld [vmem:[%s172 + $0xa8] sm:$0xff]
        %v196 = vld [vmem:[%s172 + $0xb0] sm:$0xff]
        %v197 = vld [vmem:[%s172 + $0xb8] sm:$0xff]
        %v198 = vld [vmem:[%s172 + $0xc0] sm:$0xff]
        %v199 = vld [vmem:[%s172 + $0xc8] sm:$0xff]
        %v200 = vld [vmem:[%s172 + $0xd0] sm:$0x3]
        %v201 = vld [vmem:[%s172 + $0xd8] sm:$0x3]
        %v202 = vld [vmem:[%s172 + $0xe0] sm:$0xff]
        %v203 = vld [vmem:[%s172 + $0xe8] sm:$0xff]
        %v204 = vld [vmem:[%s172 + $0xf0] sm:$0xff]
        %v205 = vld [vmem:[%s172 + $0xf8] sm:$0xff]
        %v206 = vld [vmem:[%s172 + $0x100] sm:$0xff]
        %v207 = vld [vmem:[%s172 + $0x108] sm:$0xff]
        %v208 = vld [vmem:[%s172 + $0x110] sm:$0xff]
        %v209 = vld [vmem:[%s172 + $0x118] sm:$0xff]
        %v210 = vld [vmem:[%s172 + $0x120] sm:$0xff]
        %v211 = vld [vmem:[%s172 + $0x128] sm:$0xff]
        %v212 = vld [vmem:[%s172 + $0x130] sm:$0xff]
        %v213 = vld [vmem:[%s172 + $0x138] sm:$0xff]
        %v214 = vld [vmem:[%s172 + $0x140] sm:$0x3]
        %v215 = vld [vmem:[%s172 + $0x148] sm:$0x3]
        %v216 = vld [vmem:[%s172 + $0x150] sm:$0xff]
        %v217 = vld [vmem:[%s172 + $0x158] sm:$0xff]
        %v218 = vld [vmem:[%s172 + $0x160] sm:$0xff]
        %v219 = vld [vmem:[%s172 + $0x168] sm:$0xff]
        %v220 = vld [vmem:[%s172 + $0x170] sm:$0xff]
        %v221 = vld [vmem:[%s172 + $0x178] sm:$0xff]
        %v222 = vld [vmem:[%s172 + $0x180] sm:$0xff]
        %v223 = vld [vmem:[%s172 + $0x188] sm:$0xff]
        %v224 = vld [vmem:[%s172 + $0x190] sm:$0xff]
        %v225 = vld [vmem:[%s172 + $0x198] sm:$0xff]
        %v226 = vld [vmem:[%s172 + $0x1a0] sm:$0xff]
        %v227 = vld [vmem:[%s172 + $0x1a8] sm:$0xff]
        %v228 = vld [vmem:[%s172 + $0x1b0] sm:$0x3]
        %v229 = vld [vmem:[%s172 + $0x1b8] sm:$0x3]
        %v230 = vld [vmem:[%s172 + $0x1c0] sm:$0xff]
        %v231 = vld [vmem:[%s172 + $0x1c8] sm:$0xff]
        %v232 = vld [vmem:[%s172 + $0x1d0] sm:$0xff]
        %v233 = vld [vmem:[%s172 + $0x1d8] sm:$0xff]
        %v234 = vld [vmem:[%s172 + $0x1e0] sm:$0xff]
        %v235 = vld [vmem:[%s172 + $0x1e8] sm:$0xff]
        %v236 = vld [vmem:[%s172 + $0x1f0] sm:$0xff]
        %v237 = vld [vmem:[%s172 + $0x1f8] sm:$0xff]
        %v238 = vld [vmem:[%s172 + $0x200] sm:$0xff]
        %v239 = vld [vmem:[%s172 + $0x208] sm:$0xff]
        %v240 = vld [vmem:[%s172 + $0x210] sm:$0xff]
        %v241 = vld [vmem:[%s172 + $0x218] sm:$0xff]
        %v242 = vld [vmem:[%s172 + $0x220] sm:$0x3]
        %v243 = vld [vmem:[%s172 + $0x228] sm:$0x3]
        %v244 = vld [vmem:[%s172 + $0x230] sm:$0xff]
        %v245 = vld [vmem:[%s172 + $0x238] sm:$0xff]
        %v246 = vld [vmem:[%s172 + $0x240] sm:$0xff]
        %v247 = vld [vmem:[%s172 + $0x248] sm:$0xff]
        %v248 = vld [vmem:[%s172 + $0x250] sm:$0xff]
        %v249 = vld [vmem:[%s172 + $0x258] sm:$0xff]
        %v250 = vld [vmem:[%s172 + $0x260] sm:$0xff]
        %v251 = vld [vmem:[%s172 + $0x268] sm:$0xff]
        %v252 = vld [vmem:[%s172 + $0x270] sm:$0xff]
        %v253 = vld [vmem:[%s172 + $0x278] sm:$0xff]
        %v254 = vld [vmem:[%s172 + $0x280] sm:$0xff]
        %v255 = vld [vmem:[%s172 + $0x288] sm:$0xff]
        %v256 = vld [vmem:[%s172 + $0x290] sm:$0x3]
        %v257 = vld [vmem:[%s172 + $0x298] sm:$0x3]
        %v258 = vld [vmem:[%s172 + $0x2a0] sm:$0xff]
        %v259 = vld [vmem:[%s172 + $0x2a8] sm:$0xff]
        %v260 = vld [vmem:[%s172 + $0x2b0] sm:$0xff]
        %v261 = vld [vmem:[%s172 + $0x2b8] sm:$0xff]
        %v262 = vld [vmem:[%s172 + $0x2c0] sm:$0xff]
        %v263 = vld [vmem:[%s172 + $0x2c8] sm:$0xff]
        %v264 = vld [vmem:[%s172 + $0x2d0] sm:$0xff]
        %v265 = vld [vmem:[%s172 + $0x2d8] sm:$0xff]
        %v266 = vld [vmem:[%s172 + $0x2e0] sm:$0xff]
        %v267 = vld [vmem:[%s172 + $0x2e8] sm:$0xff]
        %v268 = vld [vmem:[%s172 + $0x2f0] sm:$0xff]
        %v269 = vld [vmem:[%s172 + $0x2f8] sm:$0xff]
        %v270 = vld [vmem:[%s172 + $0x300] sm:$0x3]
        %v271 = vld [vmem:[%s172 + $0x308] sm:$0x3]
        %v272 = vld [vmem:[%s172 + $0x310] sm:$0xff]
        %v273 = vld [vmem:[%s172 + $0x318] sm:$0xff]
        %v274 = vld [vmem:[%s172 + $0x320] sm:$0xff]
        %v275 = vld [vmem:[%s172 + $0x328] sm:$0xff]
        %v276 = vld [vmem:[%s172 + $0x330] sm:$0xff]
        %v277 = vld [vmem:[%s172 + $0x338] sm:$0xff]
        %v278 = vld [vmem:[%s172 + $0x340] sm:$0xff]
        %v279 = vld [vmem:[%s172 + $0x348] sm:$0xff]
        %v280 = vld [vmem:[%s172 + $0x350] sm:$0xff]
        %v281 = vld [vmem:[%s172 + $0x358] sm:$0xff]
        %v282 = vld [vmem:[%s172 + $0x360] sm:$0xff]
        %v283 = vld [vmem:[%s172 + $0x368] sm:$0xff]
        %v284 = vld [vmem:[%s172 + $0x370] sm:$0x3]
        %v285 = vld [vmem:[%s172 + $0x378] sm:$0x3]
        %v286 = vadd.f32 %v174, %v176
        %v287 = vadd.f32 %v286, %v178
        %v288 = vadd.f32 %v287, %v180
        %v289 = vadd.f32 %v288, %v182
        %v290 = vadd.f32 %v289, %v184
        %vm291 = vcmask 1041408
        %v292 = vsel %vm291, %v186, 0.0
        %v293 = vadd.f32 %v290, %v292
        %v294 = vrot.slane %v293, 4
        %v295 = vadd.f32 %v293, %v294
        %v296 = vrot.slane %v295, 2
        %v297 = vadd.f32 %v295, %v296
        %v298 = vrot.slane %v297, 1
        %v299 = vadd.f32 %v297, %v298
        %v300 = vadd.f32 %v175, %v177
        %v301 = vadd.f32 %v300, %v179
        %v302 = vadd.f32 %v301, %v181
        %v303 = vadd.f32 %v302, %v183
        %v304 = vadd.f32 %v303, %v185
        %v305 = vsel %vm291, %v187, 0.0
        %v306 = vadd.f32 %v304, %v305
        %v307 = vrot.slane %v306, 4
        %v308 = vadd.f32 %v306, %v307
        %v309 = vrot.slane %v308, 2
        %v310 = vadd.f32 %v308, %v309
        %v311 = vrot.slane %v310, 1
        %v312 = vadd.f32 %v310, %v311
        %v313 = vadd.f32 %v188, %v190
        %v314 = vadd.f32 %v313, %v192
        %v315 = vadd.f32 %v314, %v194
        %v316 = vadd.f32 %v315, %v196
        %v317 = vadd.f32 %v316, %v198
        %v318 = vsel %vm291, %v200, 0.0
        %v319 = vadd.f32 %v317, %v318
        %v320 = vrot.slane %v319, 4
        %v321 = vadd.f32 %v319, %v320
        %v322 = vrot.slane %v321, 2
        %v323 = vadd.f32 %v321, %v322
        %v324 = vrot.slane %v323, 1
        %v325 = vadd.f32 %v323, %v324
        %v326 = vadd.f32 %v189, %v191
        %v327 = vadd.f32 %v326, %v193
        %v328 = vadd.f32 %v327, %v195
        %v329 = vadd.f32 %v328, %v197
        %v330 = vadd.f32 %v329, %v199
        %v331 = vsel %vm291, %v201, 0.0
        %v332 = vadd.f32 %v330, %v331
        %v333 = vrot.slane %v332, 4
        %v334 = vadd.f32 %v332, %v333
        %v335 = vrot.slane %v334, 2
        %v336 = vadd.f32 %v334, %v335
        %v337 = vrot.slane %v336, 1
        %v338 = vadd.f32 %v336, %v337
        %v339 = vadd.f32 %v202, %v204
        %v340 = vadd.f32 %v339, %v206
        %v341 = vadd.f32 %v340, %v208
        %v342 = vadd.f32 %v341, %v210
        %v343 = vadd.f32 %v342, %v212
        %v344 = vsel %vm291, %v214, 0.0
        %v345 = vadd.f32 %v343, %v344
        %v346 = vrot.slane %v345, 4
        %v347 = vadd.f32 %v345, %v346
        %v348 = vrot.slane %v347, 2
        %v349 = vadd.f32 %v347, %v348
        %v350 = vrot.slane %v349, 1
        %v351 = vadd.f32 %v349, %v350
        %v352 = vadd.f32 %v203, %v205
        %v353 = vadd.f32 %v352, %v207
        %v354 = vadd.f32 %v353, %v209
        %v355 = vadd.f32 %v354, %v211
        %v356 = vadd.f32 %v355, %v213
        %v357 = vsel %vm291, %v215, 0.0
        %v358 = vadd.f32 %v356, %v357
        %v359 = vrot.slane %v358, 4
        %v360 = vadd.f32 %v358, %v359
        %v361 = vrot.slane %v360, 2
        %v362 = vadd.f32 %v360, %v361
        %v363 = vrot.slane %v362, 1
        %v364 = vadd.f32 %v362, %v363
        %v365 = vadd.f32 %v216, %v218
        %v366 = vadd.f32 %v365, %v220
        %v367 = vadd.f32 %v366, %v222
        %v368 = vadd.f32 %v367, %v224
        %v369 = vadd.f32 %v368, %v226
        %v370 = vsel %vm291, %v228, 0.0
        %v371 = vadd.f32 %v369, %v370
        %v372 = vrot.slane %v371, 4
        %v373 = vadd.f32 %v371, %v372
        %v374 = vrot.slane %v373, 2
        %v375 = vadd.f32 %v373, %v374
        %v376 = vrot.slane %v375, 1
        %v377 = vadd.f32 %v375, %v376
        %v378 = vadd.f32 %v217, %v219
        %v379 = vadd.f32 %v378, %v221
        %v380 = vadd.f32 %v379, %v223
        %v381 = vadd.f32 %v380, %v225
        %v382 = vadd.f32 %v381, %v227
        %v383 = vsel %vm291, %v229, 0.0
        %v384 = vadd.f32 %v382, %v383
        %v385 = vrot.slane %v384, 4
        %v386 = vadd.f32 %v384, %v385
        %v387 = vrot.slane %v386, 2
        %v388 = vadd.f32 %v386, %v387
        %v389 = vrot.slane %v388, 1
        %v390 = vadd.f32 %v388, %v389
        %v391 = vadd.f32 %v230, %v232
        %v392 = vadd.f32 %v391, %v234
        %v393 = vadd.f32 %v392, %v236
        %v394 = vadd.f32 %v393, %v238
        %v395 = vadd.f32 %v394, %v240
        %v396 = vsel %vm291, %v242, 0.0
        %v397 = vadd.f32 %v395, %v396
        %v398 = vrot.slane %v397, 4
        %v399 = vadd.f32 %v397, %v398
        %v400 = vrot.slane %v399, 2
        %v401 = vadd.f32 %v399, %v400
        %v402 = vrot.slane %v401, 1
        %v403 = vadd.f32 %v401, %v402
        %v404 = vadd.f32 %v231, %v233
        %v405 = vadd.f32 %v404, %v235
        %v406 = vadd.f32 %v405, %v237
        %v407 = vadd.f32 %v406, %v239
        %v408 = vadd.f32 %v407, %v241
        %v409 = vsel %vm291, %v243, 0.0
        %v410 = vadd.f32 %v408, %v409
        %v411 = vrot.slane %v410, 4
        %v412 = vadd.f32 %v410, %v411
        %v413 = vrot.slane %v412, 2
        %v414 = vadd.f32 %v412, %v413
        %v415 = vrot.slane %v414, 1
        %v416 = vadd.f32 %v414, %v415
        %v417 = vadd.f32 %v244, %v246
        %v418 = vadd.f32 %v417, %v248
        %v419 = vadd.f32 %v418, %v250
        %v420 = vadd.f32 %v419, %v252
        %v421 = vadd.f32 %v420, %v254
        %v422 = vsel %vm291, %v256, 0.0
        %v423 = vadd.f32 %v421, %v422
        %v424 = vrot.slane %v423, 4
        %v425 = vadd.f32 %v423, %v424
        %v426 = vrot.slane %v425, 2
        %v427 = vadd.f32 %v425, %v426
        %v428 = vrot.slane %v427, 1
        %v429 = vadd.f32 %v427, %v428
        %v430 = vadd.f32 %v245, %v247
        %v431 = vadd.f32 %v430, %v249
        %v432 = vadd.f32 %v431, %v251
        %v433 = vadd.f32 %v432, %v253
        %v434 = vadd.f32 %v433, %v255
        %v435 = vsel %vm291, %v257, 0.0
        %v436 = vadd.f32 %v434, %v435
        %v437 = vrot.slane %v436, 4
        %v438 = vadd.f32 %v436, %v437
        %v439 = vrot.slane %v438, 2
        %v440 = vadd.f32 %v438, %v439
        %v441 = vrot.slane %v440, 1
        %v442 = vadd.f32 %v440, %v441
        %v443 = vadd.f32 %v258, %v260
        %v444 = vadd.f32 %v443, %v262
        %v445 = vadd.f32 %v444, %v264
        %v446 = vadd.f32 %v445, %v266
        %v447 = vadd.f32 %v446, %v268
        %v448 = vsel %vm291, %v270, 0.0
        %v449 = vadd.f32 %v447, %v448
        %v450 = vrot.slane %v449, 4
        %v451 = vadd.f32 %v449, %v450
        %v452 = vrot.slane %v451, 2
        %v453 = vadd.f32 %v451, %v452
        %v454 = vrot.slane %v453, 1
        %v455 = vadd.f32 %v453, %v454
        %v456 = vadd.f32 %v259, %v261
        %v457 = vadd.f32 %v456, %v263
        %v458 = vadd.f32 %v457, %v265
        %v459 = vadd.f32 %v458, %v267
        %v460 = vadd.f32 %v459, %v269
        %v461 = vsel %vm291, %v271, 0.0
        %v462 = vadd.f32 %v460, %v461
        %v463 = vrot.slane %v462, 4
        %v464 = vadd.f32 %v462, %v463
        %v465 = vrot.slane %v464, 2
        %v466 = vadd.f32 %v464, %v465
        %v467 = vrot.slane %v466, 1
        %v468 = vadd.f32 %v466, %v467
        %v469 = vadd.f32 %v272, %v274
        %v470 = vadd.f32 %v469, %v276
        %v471 = vadd.f32 %v470, %v278
        %v472 = vadd.f32 %v471, %v280
        %v473 = vadd.f32 %v472, %v282
        %v474 = vsel %vm291, %v284, 0.0
        %v475 = vadd.f32 %v473, %v474
        %v476 = vrot.slane %v475, 4
        %v477 = vadd.f32 %v475, %v476
        %v478 = vrot.slane %v477, 2
        %v479 = vadd.f32 %v477, %v478
        %v480 = vrot.slane %v479, 1
        %v481 = vadd.f32 %v479, %v480
        %v482 = vadd.f32 %v273, %v275
        %v483 = vadd.f32 %v482, %v277
        %v484 = vadd.f32 %v483, %v279
        %v485 = vadd.f32 %v484, %v281
        %v486 = vadd.f32 %v485, %v283
        %v487 = vsel %vm291, %v285, 0.0
        %v488 = vadd.f32 %v486, %v487
        %v489 = vrot.slane %v488, 4
        %v490 = vadd.f32 %v488, %v489
        %v491 = vrot.slane %v490, 2
        %v492 = vadd.f32 %v490, %v491
        %v493 = vrot.slane %v492, 1
        %v494 = vadd.f32 %v492, %v493
        %v495 = vmul.f32 %v299, 0.02
        %v496 = vmul.f32 %v312, 0.02
        %v497 = vmul.f32 %v325, 0.02
        %v498 = vmul.f32 %v338, 0.02
        %v499 = vmul.f32 %v351, 0.02
        %v500 = vmul.f32 %v364, 0.02
        %v501 = vmul.f32 %v377, 0.02
        %v502 = vmul.f32 %v390, 0.02
        %v503 = vmul.f32 %v403, 0.02
        %v504 = vmul.f32 %v416, 0.02
        %v505 = vmul.f32 %v429, 0.02
        %v506 = vmul.f32 %v442, 0.02
        %v507 = vmul.f32 %v455, 0.02
        %v508 = vmul.f32 %v468, 0.02
        %v509 = vmul.f32 %v481, 0.02
        %v510 = vmul.f32 %v494, 0.02
        %v511 = vld [vmem:[%s1] sm:$0xff]
        %v512 = vld [vmem:[%s1 + $0x8] sm:$0xff]
        %v513 = vld [vmem:[%s1 + $0x10] sm:$0xff]
        %v514 = vld [vmem:[%s1 + $0x18] sm:$0xff]
        %v515 = vld [vmem:[%s1 + $0x20] sm:$0xff]
        %v516 = vld [vmem:[%s1 + $0x28] sm:$0xff]
        %v517 = vld [vmem:[%s1 + $0x30] sm:$0xff]
        %v518 = vld [vmem:[%s1 + $0x38] sm:$0xff]
        %v519 = vld [vmem:[%s1 + $0x40] sm:$0xff]
        %v520 = vld [vmem:[%s1 + $0x48] sm:$0xff]
        %v521 = vld [vmem:[%s1 + $0x50] sm:$0xff]
        %v522 = vld [vmem:[%s1 + $0x58] sm:$0xff]
        %v523 = vld [vmem:[%s1 + $0x60] sm:$0xff]
        %v524 = vld [vmem:[%s1 + $0x68] sm:$0xff]
        %v525 = vld [vmem:[%s1 + $0x70] sm:$0xff]
        %v526 = vld [vmem:[%s1 + $0x78] sm:$0xff]
        %v527 = vld [vmem:[%s1 + $0x80] sm:$0xff]
        %v528 = vld [vmem:[%s1 + $0x88] sm:$0xff]
        %v529 = vld [vmem:[%s1 + $0x90] sm:$0xff]
        %v530 = vld [vmem:[%s1 + $0x98] sm:$0xff]
        %v531 = vld [vmem:[%s1 + $0xa0] sm:$0xff]
        %v532 = vld [vmem:[%s1 + $0xa8] sm:$0xff]
        %v533 = vld [vmem:[%s1 + $0xb0] sm:$0xff]
        %v534 = vld [vmem:[%s1 + $0xb8] sm:$0xff]
        %v535 = vld [vmem:[%s1 + $0xc0] sm:$0xff]
        %v536 = vld [vmem:[%s1 + $0xc8] sm:$0xff]
        %v537 = vld [vmem:[%s1 + $0xd0] sm:$0xff]
        %v538 = vld [vmem:[%s1 + $0xd8] sm:$0xff]
        %v539 = vld [vmem:[%s1 + $0xe0] sm:$0xff]
        %v540 = vld [vmem:[%s1 + $0xe8] sm:$0xff]
        %v541 = vld [vmem:[%s1 + $0xf0] sm:$0xff]
        %v542 = vld [vmem:[%s1 + $0xf8] sm:$0xff]
        %v543 = vld [vmem:[%s2] sm:$0x1]
        %v545 = vlaneseq
        %v546 = vshrl.u32 %v545, 7
        %v547 = vsub.s32 0, %v546
        %v548 = vrot.slane %v543, %v547
        %vm566 = vcmask 1041409
        %v567 = vsel %vm566, %v497, %v495
        %vm568 = vcmask 1042434
        %v569 = vsel %vm568, %v499, %v567
        %vm570 = vcmask 1043459
        %v571 = vsel %vm570, %v501, %v569
        %vm572 = vcmask 1044484
        %v573 = vsel %vm572, %v503, %v571
        %vm574 = vcmask 1045509
        %v575 = vsel %vm574, %v505, %v573
        %vm576 = vcmask 1046534
        %v577 = vsel %vm576, %v507, %v575
        %vm578 = vcmask 1047559
        %v579 = vsel %vm578, %v509, %v577
        %v580 = vsel %vm566, %v498, %v496
        %v581 = vsel %vm568, %v500, %v580
        %v582 = vsel %vm570, %v502, %v581
        %v583 = vsel %vm572, %v504, %v582
        %v584 = vsel %vm574, %v506, %v583
        %v585 = vsel %vm576, %v508, %v584
        %v586 = vsel %vm578, %v510, %v585
        %589 = vmatprep.subr.mxu0 0.0
        %590 = vmatpush1.msra.mxu0 %v526
        %591 = vmatprep.subr.mxu0 0.0
        %592 = vmatpush1.msra.mxu0 %v525
        %593 = vmatprep.subr.mxu0 0.0
        %594 = vmatpush1.msra.mxu0 %v524
        %595 = vmatprep.subr.mxu0 0.0
        %596 = vmatpush1.msra.mxu0 %v523
        %597 = vmatprep.subr.mxu0 0.0
        %598 = vmatpush1.msra.mxu0 %v522
        %599 = vmatprep.subr.mxu0 0.0
        %600 = vmatpush1.msra.mxu0 %v521
        %601 = vmatprep.subr.mxu0 0.0
        %602 = vmatpush1.msra.mxu0 %v520
        %603 = vmatprep.subr.mxu0 0.0
        %604 = vmatpush1.msra.mxu0 %v519
        %605 = vmatprep.subr.mxu0 0.0
        %606 = vmatpush1.msra.mxu0 %v518
        %607 = vmatprep.subr.mxu0 0.0
        %608 = vmatpush1.msra.mxu0 %v517
        %609 = vmatprep.subr.mxu0 0.0
        %610 = vmatpush1.msra.mxu0 %v516
        %611 = vmatprep.subr.mxu0 0.0
        %612 = vmatpush1.msra.mxu0 %v515
        %613 = vmatprep.subr.mxu0 0.0
        %614 = vmatpush1.msra.mxu0 %v514
        %615 = vmatprep.subr.mxu0 0.0
        %616 = vmatpush1.msra.mxu0 %v513
        %617 = vmatprep.subr.mxu0 0.0
        %618 = vmatpush1.msra.mxu0 %v512
        %619 = vmatprep.subr.mxu0 0.0
        %620 = vmatpush1.msra.mxu0 %v511
        %621 = vmatprep.subr.mxu0 0.0
        %622 = vmatpush2.msra.mxu0 %v542
        %623 = vmatprep.subr.mxu0 0.0
        %624 = vmatpush2.msra.mxu0 %v541
        %625 = vmatprep.subr.mxu0 0.0
        %626 = vmatpush2.msra.mxu0 %v540
        %627 = vmatprep.subr.mxu0 0.0
        %628 = vmatpush2.msra.mxu0 %v539
        %629 = vmatprep.subr.mxu0 0.0
        %630 = vmatpush2.msra.mxu0 %v538
        %631 = vmatprep.subr.mxu0 0.0
        %632 = vmatpush2.msra.mxu0 %v537
        %633 = vmatprep.subr.mxu0 0.0
        %634 = vmatpush2.msra.mxu0 %v536
        %635 = vmatprep.subr.mxu0 0.0
        %636 = vmatpush2.msra.mxu0 %v535
        %637 = vmatprep.subr.mxu0 0.0
        %638 = vmatpush2.msra.mxu0 %v534
        %639 = vmatprep.subr.mxu0 0.0
        %640 = vmatpush2.msra.mxu0 %v533
        %641 = vmatprep.subr.mxu0 0.0
        %642 = vmatpush2.msra.mxu0 %v532
        %643 = vmatprep.subr.mxu0 0.0
        %644 = vmatpush2.msra.mxu0 %v531
        %645 = vmatprep.subr.mxu0 0.0
        %646 = vmatpush2.msra.mxu0 %v530
        %647 = vmatprep.subr.mxu0 0.0
        %648 = vmatpush2.msra.mxu0 %v529
        %649 = vmatprep.subr.mxu0 0.0
        %650 = vmatpush2.msra.mxu0 %v528
        %651 = vmatprep.subr.mxu0 0.0
        %652 = vmatpush2.msra.mxu0 %v527
        %653 = vmatprep.mubr.f32.mxu0 %v586
        %654 = vmatmul.mubr.f32.gmra.mxu0 %v579
        %v655 = vpop.f32.mrf.mxu0
        %v656 = vadd.f32 %v548, %v655
        %v657 = vpop.f32.mrf.mxu0
        %658 = vdwg.mxu0
        %659 = vst [vmem:[%s166] sm:$0xff] %v656
        %s660 = sand.u32 %s93, 1
        %s661 = scalar_lea.sflag [#allocation3], %s660
        %s662 = sand.u32 %s93, 1
        %s663 = smul.addr %s662, 8
        %s664 = scalar_lea.vmem [#allocation2], %s663
        // Predicated region
        $region33: #{tpu_custom_call.1} parent=31 // pred_check
          %p665 = pneg %p103
        $region34: #{tpu_custom_call.1} parent=31 // pred_check_branch
          %667 = sbr.rel (%p665) target = $region36
        $region35: #{tpu_custom_call.1} parent=31 // pred_region
          %s669 = ssub.s32 128, 128
          %670 = vsyncadd %s661, %s669
          %s671 = smul.addr %s17, 128
          %s672 = scalar_lea.hbm %s3, %s671
          %s674 = sshll.u32 %s664, 4
          %s675 = int_to_ptr.vmem [resolvable:$true] %s674
          %677 = dma.vmem_to_hbm [thread:$0]  %s675, 128, %s672, %s661
        $region36: #{tpu_custom_call.1} parent=31 // pred_fallthru
          _
      $region32: #{tpu_custom_call.1} parent=5 // pred_fallthru
        _
      %p678 = scmp.le.s32.totalorder 2, %s12
      // Predicated region
      $region37: #{tpu_custom_call.1} parent=5 // pred_check
        %p679 = pneg %p678
      $region38: #{tpu_custom_call.1} parent=5 // pred_check_branch
        %681 = sbr.rel (%p679) target = $region40
      $region39: #{tpu_custom_call.1} parent=5 // pred_region
        %s682 = ssub.s32 %s12, 2
        // Predicated region
        $region41: #{tpu_custom_call.1} parent=39 // pred_check
          %p683 = pneg %p109
        $region42: #{tpu_custom_call.1} parent=39 // pred_check_branch
          %685 = sbr.rel (%p683) target = $region44
        $region43: #{tpu_custom_call.1} parent=39 // pred_region
          %s686 = sand.u32 %s94, 1
          %s687 = scalar_lea.sflag [#allocation3], %s686
          %s688 = sand.u32 %s94, 1
          %s689 = smul.addr %s688, 8
          %s690 = scalar_lea.vmem [#allocation2], %s689
          %691 = dma.done %s687, 128
        $region44: #{tpu_custom_call.1} parent=39 // pred_fallthru
          _
      $region40: #{tpu_custom_call.1} parent=5 // pred_fallthru
        _
    $region6: #{tpu_custom_call.1} parent=1 // loop_footer
      %s16 = sadd.s32 1, %s12
    $region7: #{tpu_custom_call.1} parent=1 // loop_footer_branch
      %11 = sbr.rel target = $region3
    $region8: #{tpu_custom_call.1} parent=1 // loop_exit
      _
    %692 = vsyncpa [#allocation3], 1
    %s693 = scalar_lea.sflag [#allocation3], 1
    %694 = vsyncpa %s693, 1

// kernel: tpu_custom_call.1
$region0: #{tpu_custom_call.1}
  #allocation0 [shape = 'u32[]', space=smem, size = 0x4, offset = 0x4, fixed_abs, tag = 'smem constant byte address 0x4 - core index']
  #allocation1 [shape = 'u32[144,128]{1,0:T(1,128)}', space=vmem, size = 0x12000, scoped, tag = 'internal scratch']
  %s0 = inlined_call_operand.vmem [shape: f32[16,50,256], index: 0, kind: input, shape index: {}]
  %s1 = inlined_call_operand.vmem [shape: f32[256,128], index: 1, kind: input, shape index: {}]
  %s2 = inlined_call_operand.vmem [shape: f32[1,128], index: 2, kind: input, shape index: {}]
  %s3 = inlined_call_operand.hbm [shape: f32[16,128], index: 3, kind: output, shape index: {}]
  %s4 = sld [smem:[#allocation0]]
  $region45: #{tpu_custom_call.1} parent=0
    _
  %s6 = ssub.s32 1, %s4
  %s7 = scalar_select 0, %s6, %s4
  $region1: #{tpu_custom_call.1} parent=0
    #allocation2 [shape = 'u8[8192]{0}', space=vmem, size = 0x2000, scoped, tag = 'output window, operand 0']
    #allocation3 [shape = 's32[2]{0}', space=sflag, size = 0x8, scoped, tag = 'scoped memory for tpu_custom_call.1']
    %8 = vsyncpa [#allocation3], 0
    %s9 = scalar_lea.sflag [#allocation3], 1
    %10 = vsyncpa %s9, 0
    loop: start=0, step=1, limit=4
    $region2: #{tpu_custom_call.1} parent=1 // loop_pre_header
      _
    $region3: #{tpu_custom_call.1} parent=1 // loop_header
      %s12 = sphi 0, %s16
      %p13 = scmp.ge.s32.totalorder %s12, 4
      %s22 = sphi 0, %s24
      %s25 = sphi 0, %s22
      %s26 = sphi 0, %s25
      %s42 = sphi 0, %s26
      %s46 = sphi 0, %s46
      %s48 = sphi 0, %s46
      %s49 = sphi 0, %s48
      %s63 = sphi 0, %s49
      %s67 = sphi 0, %s67
      %s69 = sphi 0, %s67
      %s70 = sphi 0, %s69
      %s84 = sphi 0, %s70
      %s90 = sphi 0, %s92
      %s93 = sphi 0, %s90
      %s94 = sphi 0, %s93
      %s110 = sphi 0, %s94
    $region4: #{tpu_custom_call.1} parent=1 // loop_header_branch
      %15 = sbr.rel (%p13) target = $region8
    $region5: #{tpu_custom_call.1} parent=1 // loop_body
      %s17 = ssub.s32 %s12, 1
      %s18 = ssub.s32 %s12, 2
      %s19 = sadd.s32 %s12, 1
      %s20 = ssub.s32 %s12, %s19
      %p21 = scmp.eq.s32.totalorder %s20, 0
      %s23 = sadd.s32 %s22, 1
      %s24 = scalar_select %p21, %s22, %s23
      %p27 = pneg %p21
      %p28 = scmp.eq.s32.totalorder %s12, 1
      %p29 = por %p27, %p28
      %p30 = scmp.ne.s32.totalorder %s22, %s25
      %p31 = scmp.eq.s32.totalorder %s12, 0
      %p32 = por %p30, %p31
      %p33 = scmp.ne.s32.totalorder %s22, %s25
      %p34 = scmp.eq.s32.totalorder %s17, 1
      %p35 = por %p33, %p34
      %p36 = scmp.ne.s32.totalorder %s25, %s26
      %p37 = scmp.eq.s32.totalorder %s17, 0
      %p38 = por %p36, %p37
      %p39 = scmp.ne.s32.totalorder %s25, %s26
      %p40 = scmp.eq.s32.totalorder %s18, 1
      %p41 = por %p39, %p40
      %p43 = scmp.ne.s32.totalorder %s26, %s42
      %p44 = scmp.eq.s32.totalorder %s18, 0
      %p45 = por %p43, %p44
      %s47 = sadd.s32 %s46, 1
      %p50 = scmp.eq.s32.totalorder %s12, 1
      %p51 = scmp.ne.s32.totalorder %s46, %s48
      %p52 = scmp.eq.s32.totalorder %s12, 0
      %p53 = por %p51, %p52
      %p54 = scmp.ne.s32.totalorder %s46, %s48
      %p55 = scmp.eq.s32.totalorder %s17, 1
      %p56 = por %p54, %p55
      %p57 = scmp.ne.s32.totalorder %s48, %s49
      %p58 = scmp.eq.s32.totalorder %s17, 0
      %p59 = por %p57, %p58
      %p60 = scmp.ne.s32.totalorder %s48, %s49
      %p61 = scmp.eq.s32.totalorder %s18, 1
      %p62 = por %p60, %p61
      %p64 = scmp.ne.s32.totalorder %s49, %s63
      %p65 = scmp.eq.s32.totalorder %s18, 0
      %p66 = por %p64, %p65
      %s68 = sadd.s32 %s67, 1
      %p71 = scmp.eq.s32.totalorder %s12, 1
      %p72 = scmp.ne.s32.totalorder %s67, %s69
      %p73 = scmp.eq.s32.totalorder %s12, 0
      %p74 = por %p72, %p73
      %p75 = scmp.ne.s32.totalorder %s67, %s69
      %p76 = scmp.eq.s32.totalorder %s17, 1
      %p77 = por %p75, %p76
      %p78 = scmp.ne.s32.totalorder %s69, %s70
      %p79 = scmp.eq.s32.totalorder %s17, 0
      %p80 = por %p78, %p79
      %p81 = scmp.ne.s32.totalorder %s69, %s70
      %p82 = scmp.eq.s32.totalorder %s18, 1
      %p83 = por %p81, %p82
      %p85 = scmp.ne.s32.totalorder %s70, %s84
      %p86 = scmp.eq.s32.totalorder %s18, 0
      %p87 = por %p85, %p86
      %s88 = ssub.s32 %s12, %s19
      %p89 = scmp.eq.s32.totalorder %s88, 0
      %s91 = sadd.s32 %s90, 1
      %s92 = scalar_select %p89, %s90, %s91
      %p95 = pneg %p89
      %p96 = scmp.eq.s32.totalorder %s12, 1
      %p97 = por %p95, %p96
      %p98 = scmp.ne.s32.totalorder %s90, %s93
      %p99 = scmp.eq.s32.totalorder %s12, 0
      %p100 = por %p98, %p99
      %p101 = scmp.ne.s32.totalorder %s90, %s93
      %p102 = scmp.eq.s32.totalorder %s17, 1
      %p103 = por %p101, %p102
      %p104 = scmp.ne.s32.totalorder %s93, %s94
      %p105 = scmp.eq.s32.totalorder %s17, 0
      %p106 = por %p104, %p105
      %p107 = scmp.ne.s32.totalorder %s93, %s94
      %p108 = scmp.eq.s32.totalorder %s18, 1
      %p109 = por %p107, %p108
      %p111 = scmp.ne.s32.totalorder %s94, %s110
      %p112 = scmp.eq.s32.totalorder %s18, 0
      %p113 = por %p111, %p112
      %p114 = scmp.le.s32.totalorder 1, %s12
      %p115 = scmp.lt.s32.totalorder %s12, 3
      %p116 = pnand %p114, %p115
      %p117 = pneg %p116
      // Predicated region
      $region9: #{tpu_custom_call.1} parent=5 // pred_check
        _
      $region10: #{tpu_custom_call.1} parent=5 // pred_check_branch
        %119 = sbr.rel (%p116) target = $region12
      $region11: #{tpu_custom_call.1} parent=5 // pred_region
        %s120 = ssub.s32 %s12, 1
        // Predicated region
        $region13: #{tpu_custom_call.1} parent=11 // pred_check
          %p121 = pneg %p59
        $region14: #{tpu_custom_call.1} parent=11 // pred_check_branch
          %123 = sbr.rel (%p121) target = $region16
        $region15: #{tpu_custom_call.1} parent=11 // pred_region
          _
        $region16: #{tpu_custom_call.1} parent=11 // pred_fallthru
          _
        // Predicated region
        $region17: #{tpu_custom_call.1} parent=11 // pred_check
          %p124 = pneg %p80
        $region18: #{tpu_custom_call.1} parent=11 // pred_check_branch
          %126 = sbr.rel (%p124) target = $region20
        $region19: #{tpu_custom_call.1} parent=11 // pred_region
          _
        $region20: #{tpu_custom_call.1} parent=11 // pred_fallthru
          _
      $region12: #{tpu_custom_call.1} parent=5 // pred_fallthru
        _
      %p127 = scmp.lt.s32.totalorder %s12, 2
      // Predicated region
      $region21: #{tpu_custom_call.1} parent=5 // pred_check
        %p128 = pneg %p127
      $region22: #{tpu_custom_call.1} parent=5 // pred_check_branch
        %130 = sbr.rel (%p128) target = $region24
      $region23: #{tpu_custom_call.1} parent=5 // pred_region
        // Predicated region
        $region25: #{tpu_custom_call.1} parent=23 // pred_check
          %p131 = pneg %p32
        $region26: #{tpu_custom_call.1} parent=23 // pred_check_branch
          %133 = sbr.rel (%p131) target = $region28
        $region27: #{tpu_custom_call.1} parent=23 // pred_region
          %s134 = smul.u32 8, %s12
          %p135 = scmp.lt.s32.totalorder %s134, 15
          %s136 = scalar_select %p135, %s134, 15
          %s137 = smul.addr %s136, 14
          %s138 = smul.addr %s137, 8
          %s139 = scalar_lea.vmem %s0, %s138
          %s140 = smul.u32 8, %s12
        $region28: #{tpu_custom_call.1} parent=23 // pred_fallthru
          _
      $region24: #{tpu_custom_call.1} parent=5 // pred_fallthru
        _
      %p141 = scmp.le.s32.totalorder 1, %s12
      %p142 = scmp.lt.s32.totalorder %s12, 3
      %p143 = pnand %p141, %p142
      %p144 = pneg %p143
      // Predicated region
      $region29: #{tpu_custom_call.1} parent=5 // pred_check
        _
      $region30: #{tpu_custom_call.1} parent=5 // pred_check_branch
        %146 = sbr.rel (%p143) target = $region32
      $region31: #{tpu_custom_call.1} parent=5 // pred_region
        %s147 = ssub.s32 %s12, 1
        %s148 = smul.u32 8, %s17
        %p149 = scmp.lt.s32.totalorder %s148, 15
        %s150 = scalar_select %p149, %s148, 15
        %s151 = smul.addr %s150, 14
        %s152 = smul.addr %s151, 8
        %s153 = scalar_lea.vmem %s0, %s152
        %p154 = pneg %p38
        %p155 = pneg %p35
        %p156 = pneg %p59
        %p157 = pneg %p56
        %p158 = pneg %p80
        %p159 = pneg %p77
        %p160 = pneg %p106
        %p161 = pneg %p103
        %s162 = sand.u32 %s93, 1
        %s163 = scalar_lea.sflag [#allocation3], %s162
        %s164 = sand.u32 %s93, 1
        %s165 = smul.addr %s164, 8
        %s166 = scalar_lea.vmem [#allocation2], %s165
        %s167 = smul.u32 8, %s17
        %p168 = scmp.lt.s32.totalorder %s167, 15
        %s169 = scalar_select %p168, %s167, 15
        %s170 = smul.addr %s169, 14
        %s171 = smul.addr %s170, 8
        %s172 = scalar_lea.vmem %s0, %s171
        %s173 = smul.u32 8, %s17
        %v174 = vld [vmem:[%s172] sm:$0xff]
        %v175 = vld [vmem:[%s172 + $0x8] sm:$0xff]
        %v176 = vld [vmem:[%s172 + $0x10] sm:$0xff]
        %v177 = vld [vmem:[%s172 + $0x18] sm:$0xff]
        %v178 = vld [vmem:[%s172 + $0x20] sm:$0xff]
        %v179 = vld [vmem:[%s172 + $0x28] sm:$0xff]
        %v180 = vld [vmem:[%s172 + $0x30] sm:$0xff]
        %v181 = vld [vmem:[%s172 + $0x38] sm:$0xff]
        %v182 = vld [vmem:[%s172 + $0x40] sm:$0xff]
        %v183 = vld [vmem:[%s172 + $0x48] sm:$0xff]
        %v184 = vld [vmem:[%s172 + $0x50] sm:$0xff]
        %v185 = vld [vmem:[%s172 + $0x58] sm:$0xff]
        %v186 = vld [vmem:[%s172 + $0x60] sm:$0x3]
        %v187 = vld [vmem:[%s172 + $0x68] sm:$0x3]
        %v188 = vld [vmem:[%s172 + $0x70] sm:$0xff]
        %v189 = vld [vmem:[%s172 + $0x78] sm:$0xff]
        %v190 = vld [vmem:[%s172 + $0x80] sm:$0xff]
        %v191 = vld [vmem:[%s172 + $0x88] sm:$0xff]
        %v192 = vld [vmem:[%s172 + $0x90] sm:$0xff]
        %v193 = vld [vmem:[%s172 + $0x98] sm:$0xff]
        %v194 = vld [vmem:[%s172 + $0xa0] sm:$0xff]
        %v195 = vld [vmem:[%s172 + $0xa8] sm:$0xff]
        %v196 = vld [vmem:[%s172 + $0xb0] sm:$0xff]
        %v197 = vld [vmem:[%s172 + $0xb8] sm:$0xff]
        %v198 = vld [vmem:[%s172 + $0xc0] sm:$0xff]
        %v199 = vld [vmem:[%s172 + $0xc8] sm:$0xff]
        %v200 = vld [vmem:[%s172 + $0xd0] sm:$0x3]
        %v201 = vld [vmem:[%s172 + $0xd8] sm:$0x3]
        %v202 = vld [vmem:[%s172 + $0xe0] sm:$0xff]
        %v203 = vld [vmem:[%s172 + $0xe8] sm:$0xff]
        %v204 = vld [vmem:[%s172 + $0xf0] sm:$0xff]
        %v205 = vld [vmem:[%s172 + $0xf8] sm:$0xff]
        %v206 = vld [vmem:[%s172 + $0x100] sm:$0xff]
        %v207 = vld [vmem:[%s172 + $0x108] sm:$0xff]
        %v208 = vld [vmem:[%s172 + $0x110] sm:$0xff]
        %v209 = vld [vmem:[%s172 + $0x118] sm:$0xff]
        %v210 = vld [vmem:[%s172 + $0x120] sm:$0xff]
        %v211 = vld [vmem:[%s172 + $0x128] sm:$0xff]
        %v212 = vld [vmem:[%s172 + $0x130] sm:$0xff]
        %v213 = vld [vmem:[%s172 + $0x138] sm:$0xff]
        %v214 = vld [vmem:[%s172 + $0x140] sm:$0x3]
        %v215 = vld [vmem:[%s172 + $0x148] sm:$0x3]
        %v216 = vld [vmem:[%s172 + $0x150] sm:$0xff]
        %v217 = vld [vmem:[%s172 + $0x158] sm:$0xff]
        %v218 = vld [vmem:[%s172 + $0x160] sm:$0xff]
        %v219 = vld [vmem:[%s172 + $0x168] sm:$0xff]
        %v220 = vld [vmem:[%s172 + $0x170] sm:$0xff]
        %v221 = vld [vmem:[%s172 + $0x178] sm:$0xff]
        %v222 = vld [vmem:[%s172 + $0x180] sm:$0xff]
        %v223 = vld [vmem:[%s172 + $0x188] sm:$0xff]
        %v224 = vld [vmem:[%s172 + $0x190] sm:$0xff]
        %v225 = vld [vmem:[%s172 + $0x198] sm:$0xff]
        %v226 = vld [vmem:[%s172 + $0x1a0] sm:$0xff]
        %v227 = vld [vmem:[%s172 + $0x1a8] sm:$0xff]
        %v228 = vld [vmem:[%s172 + $0x1b0] sm:$0x3]
        %v229 = vld [vmem:[%s172 + $0x1b8] sm:$0x3]
        %v230 = vld [vmem:[%s172 + $0x1c0] sm:$0xff]
        %v231 = vld [vmem:[%s172 + $0x1c8] sm:$0xff]
        %v232 = vld [vmem:[%s172 + $0x1d0] sm:$0xff]
        %v233 = vld [vmem:[%s172 + $0x1d8] sm:$0xff]
        %v234 = vld [vmem:[%s172 + $0x1e0] sm:$0xff]
        %v235 = vld [vmem:[%s172 + $0x1e8] sm:$0xff]
        %v236 = vld [vmem:[%s172 + $0x1f0] sm:$0xff]
        %v237 = vld [vmem:[%s172 + $0x1f8] sm:$0xff]
        %v238 = vld [vmem:[%s172 + $0x200] sm:$0xff]
        %v239 = vld [vmem:[%s172 + $0x208] sm:$0xff]
        %v240 = vld [vmem:[%s172 + $0x210] sm:$0xff]
        %v241 = vld [vmem:[%s172 + $0x218] sm:$0xff]
        %v242 = vld [vmem:[%s172 + $0x220] sm:$0x3]
        %v243 = vld [vmem:[%s172 + $0x228] sm:$0x3]
        %v244 = vld [vmem:[%s172 + $0x230] sm:$0xff]
        %v245 = vld [vmem:[%s172 + $0x238] sm:$0xff]
        %v246 = vld [vmem:[%s172 + $0x240] sm:$0xff]
        %v247 = vld [vmem:[%s172 + $0x248] sm:$0xff]
        %v248 = vld [vmem:[%s172 + $0x250] sm:$0xff]
        %v249 = vld [vmem:[%s172 + $0x258] sm:$0xff]
        %v250 = vld [vmem:[%s172 + $0x260] sm:$0xff]
        %v251 = vld [vmem:[%s172 + $0x268] sm:$0xff]
        %v252 = vld [vmem:[%s172 + $0x270] sm:$0xff]
        %v253 = vld [vmem:[%s172 + $0x278] sm:$0xff]
        %v254 = vld [vmem:[%s172 + $0x280] sm:$0xff]
        %v255 = vld [vmem:[%s172 + $0x288] sm:$0xff]
        %v256 = vld [vmem:[%s172 + $0x290] sm:$0x3]
        %v257 = vld [vmem:[%s172 + $0x298] sm:$0x3]
        %v258 = vld [vmem:[%s172 + $0x2a0] sm:$0xff]
        %v259 = vld [vmem:[%s172 + $0x2a8] sm:$0xff]
        %v260 = vld [vmem:[%s172 + $0x2b0] sm:$0xff]
        %v261 = vld [vmem:[%s172 + $0x2b8] sm:$0xff]
        %v262 = vld [vmem:[%s172 + $0x2c0] sm:$0xff]
        %v263 = vld [vmem:[%s172 + $0x2c8] sm:$0xff]
        %v264 = vld [vmem:[%s172 + $0x2d0] sm:$0xff]
        %v265 = vld [vmem:[%s172 + $0x2d8] sm:$0xff]
        %v266 = vld [vmem:[%s172 + $0x2e0] sm:$0xff]
        %v267 = vld [vmem:[%s172 + $0x2e8] sm:$0xff]
        %v268 = vld [vmem:[%s172 + $0x2f0] sm:$0xff]
        %v269 = vld [vmem:[%s172 + $0x2f8] sm:$0xff]
        %v270 = vld [vmem:[%s172 + $0x300] sm:$0x3]
        %v271 = vld [vmem:[%s172 + $0x308] sm:$0x3]
        %v272 = vld [vmem:[%s172 + $0x310] sm:$0xff]
        %v273 = vld [vmem:[%s172 + $0x318] sm:$0xff]
        %v274 = vld [vmem:[%s172 + $0x320] sm:$0xff]
        %v275 = vld [vmem:[%s172 + $0x328] sm:$0xff]
        %v276 = vld [vmem:[%s172 + $0x330] sm:$0xff]
        %v277 = vld [vmem:[%s172 + $0x338] sm:$0xff]
        %v278 = vld [vmem:[%s172 + $0x340] sm:$0xff]
        %v279 = vld [vmem:[%s172 + $0x348] sm:$0xff]
        %v280 = vld [vmem:[%s172 + $0x350] sm:$0xff]
        %v281 = vld [vmem:[%s172 + $0x358] sm:$0xff]
        %v282 = vld [vmem:[%s172 + $0x360] sm:$0xff]
        %v283 = vld [vmem:[%s172 + $0x368] sm:$0xff]
        %v284 = vld [vmem:[%s172 + $0x370] sm:$0x3]
        %v285 = vld [vmem:[%s172 + $0x378] sm:$0x3]
        %v286 = vadd.f32 %v174, %v176
        %v287 = vadd.f32 %v286, %v178
        %v288 = vadd.f32 %v287, %v180
        %v289 = vadd.f32 %v288, %v182
        %v290 = vadd.f32 %v289, %v184
        %vm291 = vcmask 1041408
        %v292 = vsel %vm291, %v186, 0.0
        %v293 = vadd.f32 %v290, %v292
        %v294 = vrot.slane %v293, 4
        %v295 = vadd.f32 %v293, %v294
        %v296 = vrot.slane %v295, 2
        %v297 = vadd.f32 %v295, %v296
        %v298 = vrot.slane %v297, 1
        %v299 = vadd.f32 %v297, %v298
        %v300 = vadd.f32 %v175, %v177
        %v301 = vadd.f32 %v300, %v179
        %v302 = vadd.f32 %v301, %v181
        %v303 = vadd.f32 %v302, %v183
        %v304 = vadd.f32 %v303, %v185
        %v305 = vsel %vm291, %v187, 0.0
        %v306 = vadd.f32 %v304, %v305
        %v307 = vrot.slane %v306, 4
        %v308 = vadd.f32 %v306, %v307
        %v309 = vrot.slane %v308, 2
        %v310 = vadd.f32 %v308, %v309
        %v311 = vrot.slane %v310, 1
        %v312 = vadd.f32 %v310, %v311
        %v313 = vadd.f32 %v188, %v190
        %v314 = vadd.f32 %v313, %v192
        %v315 = vadd.f32 %v314, %v194
        %v316 = vadd.f32 %v315, %v196
        %v317 = vadd.f32 %v316, %v198
        %v318 = vsel %vm291, %v200, 0.0
        %v319 = vadd.f32 %v317, %v318
        %v320 = vrot.slane %v319, 4
        %v321 = vadd.f32 %v319, %v320
        %v322 = vrot.slane %v321, 2
        %v323 = vadd.f32 %v321, %v322
        %v324 = vrot.slane %v323, 1
        %v325 = vadd.f32 %v323, %v324
        %v326 = vadd.f32 %v189, %v191
        %v327 = vadd.f32 %v326, %v193
        %v328 = vadd.f32 %v327, %v195
        %v329 = vadd.f32 %v328, %v197
        %v330 = vadd.f32 %v329, %v199
        %v331 = vsel %vm291, %v201, 0.0
        %v332 = vadd.f32 %v330, %v331
        %v333 = vrot.slane %v332, 4
        %v334 = vadd.f32 %v332, %v333
        %v335 = vrot.slane %v334, 2
        %v336 = vadd.f32 %v334, %v335
        %v337 = vrot.slane %v336, 1
        %v338 = vadd.f32 %v336, %v337
        %v339 = vadd.f32 %v202, %v204
        %v340 = vadd.f32 %v339, %v206
        %v341 = vadd.f32 %v340, %v208
        %v342 = vadd.f32 %v341, %v210
        %v343 = vadd.f32 %v342, %v212
        %v344 = vsel %vm291, %v214, 0.0
        %v345 = vadd.f32 %v343, %v344
        %v346 = vrot.slane %v345, 4
        %v347 = vadd.f32 %v345, %v346
        %v348 = vrot.slane %v347, 2
        %v349 = vadd.f32 %v347, %v348
        %v350 = vrot.slane %v349, 1
        %v351 = vadd.f32 %v349, %v350
        %v352 = vadd.f32 %v203, %v205
        %v353 = vadd.f32 %v352, %v207
        %v354 = vadd.f32 %v353, %v209
        %v355 = vadd.f32 %v354, %v211
        %v356 = vadd.f32 %v355, %v213
        %v357 = vsel %vm291, %v215, 0.0
        %v358 = vadd.f32 %v356, %v357
        %v359 = vrot.slane %v358, 4
        %v360 = vadd.f32 %v358, %v359
        %v361 = vrot.slane %v360, 2
        %v362 = vadd.f32 %v360, %v361
        %v363 = vrot.slane %v362, 1
        %v364 = vadd.f32 %v362, %v363
        %v365 = vadd.f32 %v216, %v218
        %v366 = vadd.f32 %v365, %v220
        %v367 = vadd.f32 %v366, %v222
        %v368 = vadd.f32 %v367, %v224
        %v369 = vadd.f32 %v368, %v226
        %v370 = vsel %vm291, %v228, 0.0
        %v371 = vadd.f32 %v369, %v370
        %v372 = vrot.slane %v371, 4
        %v373 = vadd.f32 %v371, %v372
        %v374 = vrot.slane %v373, 2
        %v375 = vadd.f32 %v373, %v374
        %v376 = vrot.slane %v375, 1
        %v377 = vadd.f32 %v375, %v376
        %v378 = vadd.f32 %v217, %v219
        %v379 = vadd.f32 %v378, %v221
        %v380 = vadd.f32 %v379, %v223
        %v381 = vadd.f32 %v380, %v225
        %v382 = vadd.f32 %v381, %v227
        %v383 = vsel %vm291, %v229, 0.0
        %v384 = vadd.f32 %v382, %v383
        %v385 = vrot.slane %v384, 4
        %v386 = vadd.f32 %v384, %v385
        %v387 = vrot.slane %v386, 2
        %v388 = vadd.f32 %v386, %v387
        %v389 = vrot.slane %v388, 1
        %v390 = vadd.f32 %v388, %v389
        %v391 = vadd.f32 %v230, %v232
        %v392 = vadd.f32 %v391, %v234
        %v393 = vadd.f32 %v392, %v236
        %v394 = vadd.f32 %v393, %v238
        %v395 = vadd.f32 %v394, %v240
        %v396 = vsel %vm291, %v242, 0.0
        %v397 = vadd.f32 %v395, %v396
        %v398 = vrot.slane %v397, 4
        %v399 = vadd.f32 %v397, %v398
        %v400 = vrot.slane %v399, 2
        %v401 = vadd.f32 %v399, %v400
        %v402 = vrot.slane %v401, 1
        %v403 = vadd.f32 %v401, %v402
        %v404 = vadd.f32 %v231, %v233
        %v405 = vadd.f32 %v404, %v235
        %v406 = vadd.f32 %v405, %v237
        %v407 = vadd.f32 %v406, %v239
        %v408 = vadd.f32 %v407, %v241
        %v409 = vsel %vm291, %v243, 0.0
        %v410 = vadd.f32 %v408, %v409
        %v411 = vrot.slane %v410, 4
        %v412 = vadd.f32 %v410, %v411
        %v413 = vrot.slane %v412, 2
        %v414 = vadd.f32 %v412, %v413
        %v415 = vrot.slane %v414, 1
        %v416 = vadd.f32 %v414, %v415
        %v417 = vadd.f32 %v244, %v246
        %v418 = vadd.f32 %v417, %v248
        %v419 = vadd.f32 %v418, %v250
        %v420 = vadd.f32 %v419, %v252
        %v421 = vadd.f32 %v420, %v254
        %v422 = vsel %vm291, %v256, 0.0
        %v423 = vadd.f32 %v421, %v422
        %v424 = vrot.slane %v423, 4
        %v425 = vadd.f32 %v423, %v424
        %v426 = vrot.slane %v425, 2
        %v427 = vadd.f32 %v425, %v426
        %v428 = vrot.slane %v427, 1
        %v429 = vadd.f32 %v427, %v428
        %v430 = vadd.f32 %v245, %v247
        %v431 = vadd.f32 %v430, %v249
        %v432 = vadd.f32 %v431, %v251
        %v433 = vadd.f32 %v432, %v253
        %v434 = vadd.f32 %v433, %v255
        %v435 = vsel %vm291, %v257, 0.0
        %v436 = vadd.f32 %v434, %v435
        %v437 = vrot.slane %v436, 4
        %v438 = vadd.f32 %v436, %v437
        %v439 = vrot.slane %v438, 2
        %v440 = vadd.f32 %v438, %v439
        %v441 = vrot.slane %v440, 1
        %v442 = vadd.f32 %v440, %v441
        %v443 = vadd.f32 %v258, %v260
        %v444 = vadd.f32 %v443, %v262
        %v445 = vadd.f32 %v444, %v264
        %v446 = vadd.f32 %v445, %v266
        %v447 = vadd.f32 %v446, %v268
        %v448 = vsel %vm291, %v270, 0.0
        %v449 = vadd.f32 %v447, %v448
        %v450 = vrot.slane %v449, 4
        %v451 = vadd.f32 %v449, %v450
        %v452 = vrot.slane %v451, 2
        %v453 = vadd.f32 %v451, %v452
        %v454 = vrot.slane %v453, 1
        %v455 = vadd.f32 %v453, %v454
        %v456 = vadd.f32 %v259, %v261
        %v457 = vadd.f32 %v456, %v263
        %v458 = vadd.f32 %v457, %v265
        %v459 = vadd.f32 %v458, %v267
        %v460 = vadd.f32 %v459, %v269
        %v461 = vsel %vm291, %v271, 0.0
        %v462 = vadd.f32 %v460, %v461
        %v463 = vrot.slane %v462, 4
        %v464 = vadd.f32 %v462, %v463
        %v465 = vrot.slane %v464, 2
        %v466 = vadd.f32 %v464, %v465
        %v467 = vrot.slane %v466, 1
        %v468 = vadd.f32 %v466, %v467
        %v469 = vadd.f32 %v272, %v274
        %v470 = vadd.f32 %v469, %v276
        %v471 = vadd.f32 %v470, %v278
        %v472 = vadd.f32 %v471, %v280
        %v473 = vadd.f32 %v472, %v282
        %v474 = vsel %vm291, %v284, 0.0
        %v475 = vadd.f32 %v473, %v474
        %v476 = vrot.slane %v475, 4
        %v477 = vadd.f32 %v475, %v476
        %v478 = vrot.slane %v477, 2
        %v479 = vadd.f32 %v477, %v478
        %v480 = vrot.slane %v479, 1
        %v481 = vadd.f32 %v479, %v480
        %v482 = vadd.f32 %v273, %v275
        %v483 = vadd.f32 %v482, %v277
        %v484 = vadd.f32 %v483, %v279
        %v485 = vadd.f32 %v484, %v281
        %v486 = vadd.f32 %v485, %v283
        %v487 = vsel %vm291, %v285, 0.0
        %v488 = vadd.f32 %v486, %v487
        %v489 = vrot.slane %v488, 4
        %v490 = vadd.f32 %v488, %v489
        %v491 = vrot.slane %v490, 2
        %v492 = vadd.f32 %v490, %v491
        %v493 = vrot.slane %v492, 1
        %v494 = vadd.f32 %v492, %v493
        %v495 = vmul.f32 %v299, 0.02
        %v496 = vmul.f32 %v312, 0.02
        %v497 = vmul.f32 %v325, 0.02
        %v498 = vmul.f32 %v338, 0.02
        %v499 = vmul.f32 %v351, 0.02
        %v500 = vmul.f32 %v364, 0.02
        %v501 = vmul.f32 %v377, 0.02
        %v502 = vmul.f32 %v390, 0.02
        %v503 = vmul.f32 %v403, 0.02
        %v504 = vmul.f32 %v416, 0.02
        %v505 = vmul.f32 %v429, 0.02
        %v506 = vmul.f32 %v442, 0.02
        %v507 = vmul.f32 %v455, 0.02
        %v508 = vmul.f32 %v468, 0.02
        %v509 = vmul.f32 %v481, 0.02
        %v510 = vmul.f32 %v494, 0.02
        %v511 = vld [vmem:[%s1] sm:$0xff]
        %v512 = vld [vmem:[%s1 + $0x8] sm:$0xff]
        %v513 = vld [vmem:[%s1 + $0x10] sm:$0xff]
        %v514 = vld [vmem:[%s1 + $0x18] sm:$0xff]
        %v515 = vld [vmem:[%s1 + $0x20] sm:$0xff]
        %v516 = vld [vmem:[%s1 + $0x28] sm:$0xff]
        %v517 = vld [vmem:[%s1 + $0x30] sm:$0xff]
        %v518 = vld [vmem:[%s1 + $0x38] sm:$0xff]
        %v519 = vld [vmem:[%s1 + $0x40] sm:$0xff]
        %v520 = vld [vmem:[%s1 + $0x48] sm:$0xff]
        %v521 = vld [vmem:[%s1 + $0x50] sm:$0xff]
        %v522 = vld [vmem:[%s1 + $0x58] sm:$0xff]
        %v523 = vld [vmem:[%s1 + $0x60] sm:$0xff]
        %v524 = vld [vmem:[%s1 + $0x68] sm:$0xff]
        %v525 = vld [vmem:[%s1 + $0x70] sm:$0xff]
        %v526 = vld [vmem:[%s1 + $0x78] sm:$0xff]
        %v527 = vld [vmem:[%s1 + $0x80] sm:$0xff]
        %v528 = vld [vmem:[%s1 + $0x88] sm:$0xff]
        %v529 = vld [vmem:[%s1 + $0x90] sm:$0xff]
        %v530 = vld [vmem:[%s1 + $0x98] sm:$0xff]
        %v531 = vld [vmem:[%s1 + $0xa0] sm:$0xff]
        %v532 = vld [vmem:[%s1 + $0xa8] sm:$0xff]
        %v533 = vld [vmem:[%s1 + $0xb0] sm:$0xff]
        %v534 = vld [vmem:[%s1 + $0xb8] sm:$0xff]
        %v535 = vld [vmem:[%s1 + $0xc0] sm:$0xff]
        %v536 = vld [vmem:[%s1 + $0xc8] sm:$0xff]
        %v537 = vld [vmem:[%s1 + $0xd0] sm:$0xff]
        %v538 = vld [vmem:[%s1 + $0xd8] sm:$0xff]
        %v539 = vld [vmem:[%s1 + $0xe0] sm:$0xff]
        %v540 = vld [vmem:[%s1 + $0xe8] sm:$0xff]
        %v541 = vld [vmem:[%s1 + $0xf0] sm:$0xff]
        %v542 = vld [vmem:[%s1 + $0xf8] sm:$0xff]
        %v543 = vld [vmem:[%s2] sm:$0x1]
        %v545 = vlaneseq
        %v546 = vshrl.u32 %v545, 7
        %v547 = vsub.s32 0, %v546
        %v548 = vrot.slane %v543, %v547
        %vm566 = vcmask 1041409
        %v567 = vsel %vm566, %v497, %v495
        %vm568 = vcmask 1042434
        %v569 = vsel %vm568, %v499, %v567
        %vm570 = vcmask 1043459
        %v571 = vsel %vm570, %v501, %v569
        %vm572 = vcmask 1044484
        %v573 = vsel %vm572, %v503, %v571
        %vm574 = vcmask 1045509
        %v575 = vsel %vm574, %v505, %v573
        %vm576 = vcmask 1046534
        %v577 = vsel %vm576, %v507, %v575
        %vm578 = vcmask 1047559
        %v579 = vsel %vm578, %v509, %v577
        %v580 = vsel %vm566, %v498, %v496
        %v581 = vsel %vm568, %v500, %v580
        %v582 = vsel %vm570, %v502, %v581
        %v583 = vsel %vm572, %v504, %v582
        %v584 = vsel %vm574, %v506, %v583
        %v585 = vsel %vm576, %v508, %v584
        %v586 = vsel %vm578, %v510, %v585
        %589 = vmatprep.subr.mxu0 0.0
        %590 = vmatpush1.msra.mxu0 %v526
        %591 = vmatprep.subr.mxu0 0.0
        %592 = vmatpush1.msra.mxu0 %v525
        %593 = vmatprep.subr.mxu0 0.0
        %594 = vmatpush1.msra.mxu0 %v524
        %595 = vmatprep.subr.mxu0 0.0
        %596 = vmatpush1.msra.mxu0 %v523
        %597 = vmatprep.subr.mxu0 0.0
        %598 = vmatpush1.msra.mxu0 %v522
        %599 = vmatprep.subr.mxu0 0.0
        %600 = vmatpush1.msra.mxu0 %v521
        %601 = vmatprep.subr.mxu0 0.0
        %602 = vmatpush1.msra.mxu0 %v520
        %603 = vmatprep.subr.mxu0 0.0
        %604 = vmatpush1.msra.mxu0 %v519
        %605 = vmatprep.subr.mxu0 0.0
        %606 = vmatpush1.msra.mxu0 %v518
        %607 = vmatprep.subr.mxu0 0.0
        %608 = vmatpush1.msra.mxu0 %v517
        %609 = vmatprep.subr.mxu0 0.0
        %610 = vmatpush1.msra.mxu0 %v516
        %611 = vmatprep.subr.mxu0 0.0
        %612 = vmatpush1.msra.mxu0 %v515
        %613 = vmatprep.subr.mxu0 0.0
        %614 = vmatpush1.msra.mxu0 %v514
        %615 = vmatprep.subr.mxu0 0.0
        %616 = vmatpush1.msra.mxu0 %v513
        %617 = vmatprep.subr.mxu0 0.0
        %618 = vmatpush1.msra.mxu0 %v512
        %619 = vmatprep.subr.mxu0 0.0
        %620 = vmatpush1.msra.mxu0 %v511
        %621 = vmatprep.subr.mxu0 0.0
        %622 = vmatpush2.msra.mxu0 %v542
        %623 = vmatprep.subr.mxu0 0.0
        %624 = vmatpush2.msra.mxu0 %v541
        %625 = vmatprep.subr.mxu0 0.0
        %626 = vmatpush2.msra.mxu0 %v540
        %627 = vmatprep.subr.mxu0 0.0
        %628 = vmatpush2.msra.mxu0 %v539
        %629 = vmatprep.subr.mxu0 0.0
        %630 = vmatpush2.msra.mxu0 %v538
        %631 = vmatprep.subr.mxu0 0.0
        %632 = vmatpush2.msra.mxu0 %v537
        %633 = vmatprep.subr.mxu0 0.0
        %634 = vmatpush2.msra.mxu0 %v536
        %635 = vmatprep.subr.mxu0 0.0
        %636 = vmatpush2.msra.mxu0 %v535
        %637 = vmatprep.subr.mxu0 0.0
        %638 = vmatpush2.msra.mxu0 %v534
        %639 = vmatprep.subr.mxu0 0.0
        %640 = vmatpush2.msra.mxu0 %v533
        %641 = vmatprep.subr.mxu0 0.0
        %642 = vmatpush2.msra.mxu0 %v532
        %643 = vmatprep.subr.mxu0 0.0
        %644 = vmatpush2.msra.mxu0 %v531
        %645 = vmatprep.subr.mxu0 0.0
        %646 = vmatpush2.msra.mxu0 %v530
        %647 = vmatprep.subr.mxu0 0.0
        %648 = vmatpush2.msra.mxu0 %v529
        %649 = vmatprep.subr.mxu0 0.0
        %650 = vmatpush2.msra.mxu0 %v528
        %651 = vmatprep.subr.mxu0 0.0
        %652 = vmatpush2.msra.mxu0 %v527
        %653 = vmatprep.mubr.f32.mxu0 %v586
        %654 = vmatmul.mubr.f32.gmra.mxu0 %v579
        %v655 = vpop.f32.mrf.mxu0
        %v656 = vadd.f32 %v548, %v655
        %v657 = vpop.f32.mrf.mxu0
        %658 = vdwg.mxu0
        %659 = vst [vmem:[%s166] sm:$0xff] %v656
        %s660 = sand.u32 %s93, 1
        %s661 = scalar_lea.sflag [#allocation3], %s660
        %s662 = sand.u32 %s93, 1
        %s663 = smul.addr %s662, 8
        %s664 = scalar_lea.vmem [#allocation2], %s663
        // Predicated region
        $region33: #{tpu_custom_call.1} parent=31 // pred_check
          %p665 = pneg %p103
        $region34: #{tpu_custom_call.1} parent=31 // pred_check_branch
          %667 = sbr.rel (%p665) target = $region36
        $region35: #{tpu_custom_call.1} parent=31 // pred_region
          %s669 = ssub.s32 128, 128
          %670 = vsyncadd %s661, %s669
          %s671 = smul.addr %s17, 128
          %s672 = scalar_lea.hbm %s3, %s671
          %s674 = sshll.u32 %s664, 4
          %s675 = int_to_ptr.vmem [resolvable:$true] %s674
          %677 = dma.vmem_to_hbm [thread:$0]  %s675, 128, %s672, %s661
        $region36: #{tpu_custom_call.1} parent=31 // pred_fallthru
          _
      $region32: #{tpu_custom_call.1} parent=5 // pred_fallthru
        _
      %p678 = scmp.le.s32.totalorder 2, %s12
      // Predicated region
      $region37: #{tpu_custom_call.1} parent=5 // pred_check
        %p679 = pneg %p678
      $region38: #{tpu_custom_call.1} parent=5 // pred_check_branch
        %681 = sbr.rel (%p679) target = $region40
      $region39: #{tpu_custom_call.1} parent=5 // pred_region
        %s682 = ssub.s32 %s12, 2
        // Predicated region
        $region41: #{tpu_custom_call.1} parent=39 // pred_check
          %p683 = pneg %p109
        $region42: #{tpu_custom_call.1} parent=39 // pred_check_branch
          %685 = sbr.rel (%p683) target = $region44
        $region43: #{tpu_custom_call.1} parent=39 // pred_region
          %s686 = sand.u32 %s94, 1
          %s687 = scalar_lea.sflag [#allocation3], %s686
          %s688 = sand.u32 %s94, 1
          %s689 = smul.addr %s688, 8
          %s690 = scalar_lea.vmem [#allocation2], %s689
          %691 = dma.done %s687, 128
        $region44: #{tpu_custom_call.1} parent=39 // pred_fallthru
          _
      $region40: #{tpu_custom_call.1} parent=5 // pred_fallthru
        _
    $region6: #{tpu_custom_call.1} parent=1 // loop_footer
      %s16 = sadd.s32 1, %s12
    $region7: #{tpu_custom_call.1} parent=1 // loop_footer_branch
      %11 = sbr.rel target = $region3
    $region8: #{tpu_custom_call.1} parent=1 // loop_exit
      _
    %692 = vsyncpa [#allocation3], 1
    %s693 = scalar_lea.sflag [#allocation3], 1
    %694 = vsyncpa %s693, 1

</llo_original>
